<compile_context>
chip_gen: v7x
topology: tpu7x:2x2x1
jax: 0.10.0
libtpu: 0.0.40
codegen_flags: <defaults>
</compile_context>

<pallas_src>
import functools

import jax
import jax.numpy as jnp
from jax.experimental import pallas as pl
from jax.experimental.pallas import tpu as pltpu

_LANE = 128          # TPU lane width: feature dims are padded to a multiple of this
_BATCH_TILE = 256    # batch tile used only when the batch is large


def _round_up(n, m):
    return ((n + m - 1) // m) * m


def _fused_mlp_kernel(*refs, arch):
    """Whole-MLP forward in one kernel invocation.

    refs = (x_ref, w0_ref, b0_ref, w1_ref, b1_ref, ..., o_ref).
    Intermediate activations stay in registers/VMEM; only the lane-padded
    final activation is written back.
    """
    x_ref = refs[0]
    o_ref = refs[-1]
    param_refs = refs[1:-1]

    h = x_ref[...]          # f32 activations
    li = 0
    for layer in arch:
        if layer[0] == "linear":
            w = param_refs[2 * li][...]       # bf16 (din_pad, dout_pad)
            b = param_refs[2 * li + 1][...]   # f32  (1,       dout_pad)
            # bf16 MXU matmul, f32 accumulation, f32 epilogue.
            h = jnp.dot(h.astype(jnp.bfloat16), w,
                        preferred_element_type=jnp.float32)
            h = h + b
            li += 1
        elif layer[0] == "relu":
            h = jnp.maximum(h, 0.0)
        else:
            # TODO(synk): other runtime-injected layer types not implemented.
            raise NotImplementedError(layer[0])
    o_ref[...] = h.astype(o_ref.dtype)


class RuntimeNNPallas:
    """JAX/Pallas equivalent of RuntimeNN with a runtime-injected MLP arch.

    `sequential_arch` is a list of layer descriptors:
      ("linear", in_features, out_features) | ("relu",)
    """

    def __init__(self, name, sequential_arch, key):
        self.name = name
        self.arch = tuple(tuple(layer) for layer in sequential_arch)

        self.kernel_params = []   # flat [w_bf16, b_f32, ...] with lane-padded dims
        self.ref_params = []      # per-layer unpadded f32 params (reference path)
        self.out_features = None
        self.out_features_padded = None
        self._jitted = None

        prev_out_pad = None       # padded width of the previous linear's output
        for layer in self.arch:
            if layer[0] == "linear":
                _, din, dout = layer
                key, wk, bk = jax.random.split(key, 3)
                # Deterministic init mimicking torch.nn.Linear's
                # uniform(-1/sqrt(fan_in), 1/sqrt(fan_in)).
                bound = 1.0 / (float(din) ** 0.5)
                w = jax.random.uniform(wk, (din, dout), jnp.float32, -bound, bound)
                b = jax.random.uniform(bk, (1, dout), jnp.float32, -bound, bound)
                self.ref_params.append((w, b))

                # Lane-dense activations: pad output features to 128 lanes and
                # (for non-first layers) pad input rows to match the previous
                # layer's padded output.  All padding is exact zeros, so the
                # math is unchanged.
                din_pad = din if prev_out_pad is None else prev_out_pad
                dout_pad = _round_up(dout, _LANE)
                w_k = jnp.zeros((din_pad, dout_pad), jnp.float32)
                w_k = w_k.at[:din, :dout].set(w)
                b_k = jnp.zeros((1, dout_pad), jnp.float32)
                b_k = b_k.at[:, :dout].set(b)

                self.kernel_params.append(w_k.astype(jnp.bfloat16))
                self.kernel_params.append(b_k)  # bias stays f32 (f32 epilogue)

                self.out_features = dout
                self.out_features_padded = dout_pad
                prev_out_pad = dout_pad
            elif layer[0] == "relu":
                self.ref_params.append(None)
            else:
                # TODO(synk): other runtime-injected layer types not implemented.
                raise NotImplementedError(layer[0])

    # ----------------------------------------------------------------- forward
    def _forward(self, x):
        B, din = x.shape
        if self.out_features is None:            # arch with no linear layers
            out_dim = out_pad = din
        else:
            out_dim, out_pad = self.out_features, self.out_features_padded

        kernel = functools.partial(_fused_mlp_kernel, arch=self.arch)
        out_shape = jax.ShapeDtypeStruct((B, out_pad), jnp.float32)
        n_in = 1 + len(self.kernel_params)

        if B >= 2 * _BATCH_TILE and B % _BATCH_TILE == 0:
            # Large-batch path: tile the batch, keep (tiny) weights VMEM-resident
            # across iterations (invariant index_map -> no re-DMA), shard the
            # batch axis over cores (v7x megacore).
            in_specs = [pl.BlockSpec((_BATCH_TILE, din), lambda i: (i, 0))]
            for p in self.kernel_params:
                in_specs.append(pl.BlockSpec(p.shape, lambda i: (0, 0)))
            y = pl.pallas_call(
                kernel,
                out_shape=out_shape,
                grid_spec=pl.GridSpec(
                    grid=(B // _BATCH_TILE,),
                    in_specs=in_specs,
                    out_specs=pl.BlockSpec((_BATCH_TILE, out_pad),
                                           lambda i: (i, 0)),
                ),
                compiler_params=pltpu.CompilerParams(
                    dimension_semantics=("parallel",)),
            )(x, *self.kernel_params)
        else:
            # Small-batch path: single invocation, whole arrays in VMEM, no
            # grid / pipeline machinery.
            y = pl.pallas_call(
                kernel,
                out_shape=out_shape,
                in_specs=[pl.BlockSpec(memory_space=pltpu.MemorySpace.VMEM)] * n_in,
                out_specs=pl.BlockSpec(memory_space=pltpu.MemorySpace.VMEM),
            )(x, *self.kernel_params)

        if out_pad != out_dim:
            y = y[:, :out_dim]
        return y

    def __call__(self, x):
        if self._jitted is None:
            self._jitted = jax.jit(self._forward)
        return self._jitted(x)


def reference_forward(model, x):
    """Pure-JAX f32 reference matching torch.nn.Sequential semantics."""
    for layer, p in zip(model.arch, model.ref_params):
        if layer[0] == "linear":
            w, b = p
            x = x @ w + b
        elif layer[0] == "relu":
            x = jnp.maximum(x, 0.0)
    return x


if __name__ == "__main__":
    key = jax.random.PRNGKey(0)
    key, xk, mk = jax.random.split(key, 3)

    batch, hidden_in = 8, 32
    arch = [
        ("linear", hidden_in, 64),
        ("relu",),
        ("linear", 64, 64),
        ("relu",),
        ("linear", 64, 16),
    ]

    model = RuntimeNNPallas("runtime_mlp", arch, mk)
    x = jax.random.normal(xk, (batch, hidden_in), jnp.float32)

    out = jax.block_until_ready(model(x))
    ref = reference_forward(model, x)

    assert out.shape == (batch, 16), out.shape
    # Kernel uses bf16 MXU inputs with f32 accumulation; compare against the
    # full-f32 reference with a correspondingly loosened tolerance.
    assert jnp.allclose(out, ref, atol=5e-2, rtol=5e-2), float(
        jnp.max(jnp.abs(out - ref)))

    print("KERNEL_OK")
</pallas_src>

<mosaic_0001>
module attributes {stable_mosaic.version = 11 : i64} {
  func.func @_fused_mlp_kernel(%arg0: memref<8x32xf32, #tpu.memory_space<vmem>>, %arg1: memref<32x128xbf16, #tpu.memory_space<vmem>>, %arg2: memref<1x128xf32, #tpu.memory_space<vmem>>, %arg3: memref<128x128xbf16, #tpu.memory_space<vmem>>, %arg4: memref<1x128xf32, #tpu.memory_space<vmem>>, %arg5: memref<128x128xbf16, #tpu.memory_space<vmem>>, %arg6: memref<1x128xf32, #tpu.memory_space<vmem>>, %arg7: memref<8x128xf32, #tpu.memory_space<vmem>>) attributes {dimension_semantics = [], scalar_prefetch = 0 : i64, scratch_operands = 0 : i64, tpu.core_type = #tpu.core_type<tc>} {
    %c0 = arith.constant 0 : index
    %c0_0 = arith.constant 0 : index
    %0 = vector.load %arg0[%c0, %c0_0] : memref<8x32xf32, #tpu.memory_space<vmem>>, vector<8x32xf32>
    %c0_1 = arith.constant 0 : index
    %c0_2 = arith.constant 0 : index
    %1 = vector.load %arg1[%c0_1, %c0_2] : memref<32x128xbf16, #tpu.memory_space<vmem>>, vector<32x128xbf16>
    %c0_3 = arith.constant 0 : index
    %c0_4 = arith.constant 0 : index
    %2 = vector.load %arg2[%c0_3, %c0_4] : memref<1x128xf32, #tpu.memory_space<vmem>>, vector<1x128xf32>
    %3 = arith.truncf %0 : vector<8x32xf32> to vector<8x32xbf16>
    %cst = arith.constant dense<0.000000e+00> : vector<8x128xf32>
    %4 = tpu.matmul %3, %1, %cst {dimension_numbers = #tpu.dot_dimension_numbers<[1], [0], [0], [1], [0, 0, 1, 1], [], []>} : vector<8x32xbf16>, vector<32x128xbf16>, vector<8x128xf32> -> vector<8x128xf32>
    %5 = vector.broadcast %2 : vector<1x128xf32> to vector<8x128xf32>
    %6 = arith.addf %4, %5 : vector<8x128xf32>
    %cst_5 = arith.constant 0.000000e+00 : f32
    %7 = vector.broadcast %cst_5 : f32 to vector<8x128xf32>
    %8 = arith.maximumf %6, %7 : vector<8x128xf32>
    %c0_6 = arith.constant 0 : index
    %c0_7 = arith.constant 0 : index
    %9 = vector.load %arg3[%c0_6, %c0_7] : memref<128x128xbf16, #tpu.memory_space<vmem>>, vector<128x128xbf16>
    %c0_8 = arith.constant 0 : index
    %c0_9 = arith.constant 0 : index
    %10 = vector.load %arg4[%c0_8, %c0_9] : memref<1x128xf32, #tpu.memory_space<vmem>>, vector<1x128xf32>
    %11 = arith.truncf %8 : vector<8x128xf32> to vector<8x128xbf16>
    %cst_10 = arith.constant dense<0.000000e+00> : vector<8x128xf32>
    %12 = tpu.matmul %11, %9, %cst_10 {dimension_numbers = #tpu.dot_dimension_numbers<[1], [0], [0], [1], [0, 0, 1, 1], [], []>} : vector<8x128xbf16>, vector<128x128xbf16>, vector<8x128xf32> -> vector<8x128xf32>
    %13 = vector.broadcast %10 : vector<1x128xf32> to vector<8x128xf32>
    %14 = arith.addf %12, %13 : vector<8x128xf32>
    %cst_11 = arith.constant 0.000000e+00 : f32
    %15 = vector.broadcast %cst_11 : f32 to vector<8x128xf32>
    %16 = arith.maximumf %14, %15 : vector<8x128xf32>
    %c0_12 = arith.constant 0 : index
    %c0_13 = arith.constant 0 : index
    %17 = vector.load %arg5[%c0_12, %c0_13] : memref<128x128xbf16, #tpu.memory_space<vmem>>, vector<128x128xbf16>
    %c0_14 = arith.constant 0 : index
    %c0_15 = arith.constant 0 : index
    %18 = vector.load %arg6[%c0_14, %c0_15] : memref<1x128xf32, #tpu.memory_space<vmem>>, vector<1x128xf32>
    %19 = arith.truncf %16 : vector<8x128xf32> to vector<8x128xbf16>
    %cst_16 = arith.constant dense<0.000000e+00> : vector<8x128xf32>
    %20 = tpu.matmul %19, %17, %cst_16 {dimension_numbers = #tpu.dot_dimension_numbers<[1], [0], [0], [1], [0, 0, 1, 1], [], []>} : vector<8x128xbf16>, vector<128x128xbf16>, vector<8x128xf32> -> vector<8x128xf32>
    %21 = vector.broadcast %18 : vector<1x128xf32> to vector<8x128xf32>
    %22 = arith.addf %20, %21 : vector<8x128xf32>
    %c0_17 = arith.constant 0 : index
    %c0_18 = arith.constant 0 : index
    %23 = vector.load %arg7[%c0_17, %c0_18] : memref<8x128xf32, #tpu.memory_space<vmem>>, vector<8x128xf32>
    tpu.vector_store %arg7[%c0_17, %c0_18], %22 {strides = array<i32>} : memref<8x128xf32, #tpu.memory_space<vmem>>, vector<8x128xf32>,
    return
  }
}

</mosaic_0001>

<llo_original>
// kernel: _forward.1
$region0: #{_forward.1}
  #allocation0 [shape = 'u32[]', space=smem, size = 0x4, offset = 0x4, fixed_abs, tag = 'smem constant byte address 0x4 - core index']
  #allocation1 [shape = 'u32[144,128]{1,0:T(1,128)}', space=vmem, size = 0x12000, scoped, tag = 'internal scratch']
  %s0 = inlined_call_operand.vmem [shape: f32[8,32], index: 0, kind: input, shape index: {}]
  %s1 = inlined_call_operand.vmem [shape: bf16[32,128], index: 1, kind: input, shape index: {}]
  %s2 = inlined_call_operand.hbm [shape: f32[1,128], index: 2, kind: input, shape index: {}]
  %s3 = inlined_call_operand.hbm [shape: bf16[128,128], index: 3, kind: input, shape index: {}]
  %s4 = inlined_call_operand.vmem [shape: f32[1,128], index: 4, kind: input, shape index: {}]
  %s5 = inlined_call_operand.hbm [shape: bf16[128,128], index: 5, kind: input, shape index: {}]
  %s6 = inlined_call_operand.vmem [shape: f32[1,128], index: 6, kind: input, shape index: {}]
  %s7 = inlined_call_operand.hbm [shape: f32[8,128], index: 7, kind: output, shape index: {}]
  %s8 = sld [smem:[#allocation0]]
  $region50: #{_forward.1} parent=0
    _
  %s10 = ssub.s32 1, %s8
  %s11 = scalar_select 0, %s10, %s8
  $region1: #{_forward.1} parent=0
    #allocation2 [shape = 'u8[512]{0}', space=vmem, size = 0x400, scoped, tag = 'input window, operand 2, single buffered']
    #allocation3 [shape = 's32[1]{0}', space=sflag, size = 0x4, scoped, tag = 'scoped memory for _forward.1']
    #allocation4 [shape = 's32[1]{0}', space=sflag, size = 0x4, scoped, tag = 'scoped memory for _forward.1']
    #allocation5 [shape = 'u8[32768]{0}', space=vmem, size = 0x8000, scoped, tag = 'input window, operand 3, single buffered']
    #allocation6 [shape = 's32[1]{0}', space=sflag, size = 0x4, scoped, tag = 'scoped memory for _forward.1']
    #allocation7 [shape = 'u8[32768]{0}', space=vmem, size = 0x8000, scoped, tag = 'input window, operand 5, single buffered']
    #allocation8 [shape = 'u8[4096]{0}', space=vmem, size = 0x1000, scoped, tag = 'output window, operand 0, single buffered']
    %12 = vsyncpa [#allocation3], 0
    %13 = vsyncpa [#allocation6], 0
    %14 = vsyncpa [#allocation4], 0
    // Predicated region
    $region2: #{_forward.1} parent=1 // pred_check
      _
    $region3: #{_forward.1} parent=1 // pred_check_branch
      %16 = sbr.rel (0) target = $region5
    $region4: #{_forward.1} parent=1 // pred_region
      _
    $region5: #{_forward.1} parent=1 // pred_fallthru
      _
    // Predicated region
    $region6: #{_forward.1} parent=1 // pred_check
      _
    $region7: #{_forward.1} parent=1 // pred_check_branch
      %18 = sbr.rel (0) target = $region9
    $region8: #{_forward.1} parent=1 // pred_region
      _
    $region9: #{_forward.1} parent=1 // pred_fallthru
      _
    // Predicated region
    $region10: #{_forward.1} parent=1 // pred_check
      _
    $region11: #{_forward.1} parent=1 // pred_check_branch
      %20 = sbr.rel (0) target = $region13
    $region12: #{_forward.1} parent=1 // pred_region
      %s22 = ssub.s32 16, 16
      %23 = vsyncadd [#allocation3], %s22
      %s25 = sshll.u32 [#allocation2], 4
      %s26 = int_to_ptr.vmem [resolvable:$true] %s25
      %28 = dma.hbm_to_vmem [thread:$0]  %s2, 16, %s26, [#allocation3]
    $region13: #{_forward.1} parent=1 // pred_fallthru
      _
    // Predicated region
    $region14: #{_forward.1} parent=1 // pred_check
      _
    $region15: #{_forward.1} parent=1 // pred_check_branch
      %30 = sbr.rel (0) target = $region17
    $region16: #{_forward.1} parent=1 // pred_region
      %s32 = ssub.s32 1024, 1024
      %33 = vsyncadd [#allocation6], %s32
      %s34 = sshll.u32 [#allocation5], 4
      %s35 = int_to_ptr.vmem [resolvable:$true] %s34
      %40 = dma.hbm_to_vmem [thread:$0]  %s3, 1024, %s35, [#allocation6], 64, 64, 4
    $region17: #{_forward.1} parent=1 // pred_fallthru
      _
    // Predicated region
    $region18: #{_forward.1} parent=1 // pred_check
      _
    $region19: #{_forward.1} parent=1 // pred_check_branch
      %42 = sbr.rel (0) target = $region21
    $region20: #{_forward.1} parent=1 // pred_region
      _
    $region21: #{_forward.1} parent=1 // pred_fallthru
      _
    // Predicated region
    $region22: #{_forward.1} parent=1 // pred_check
      _
    $region23: #{_forward.1} parent=1 // pred_check_branch
      %44 = sbr.rel (0) target = $region25
    $region24: #{_forward.1} parent=1 // pred_region
      %s46 = ssub.s32 1024, 1024
      %47 = vsyncadd [#allocation6], %s46
      %s48 = sshll.u32 [#allocation7], 4
      %s49 = int_to_ptr.vmem [resolvable:$true] %s48
      %54 = dma.hbm_to_vmem [thread:$0]  %s5, 1024, %s49, [#allocation6], 64, 64, 4
    $region25: #{_forward.1} parent=1 // pred_fallthru
      _
    // Predicated region
    $region26: #{_forward.1} parent=1 // pred_check
      _
    $region27: #{_forward.1} parent=1 // pred_check_branch
      %56 = sbr.rel (0) target = $region29
    $region28: #{_forward.1} parent=1 // pred_region
      _
    $region29: #{_forward.1} parent=1 // pred_fallthru
      _
    // Predicated region
    $region30: #{_forward.1} parent=1 // pred_check
      _
    $region31: #{_forward.1} parent=1 // pred_check_branch
      %58 = sbr.rel (0) target = $region33
    $region32: #{_forward.1} parent=1 // pred_region
      %59 = dma.done [#allocation3], 16
    $region33: #{_forward.1} parent=1 // pred_fallthru
      _
    // Predicated region
    $region34: #{_forward.1} parent=1 // pred_check
      _
    $region35: #{_forward.1} parent=1 // pred_check_branch
      %61 = sbr.rel (0) target = $region37
    $region36: #{_forward.1} parent=1 // pred_region
      %62 = dma.done [#allocation6], 1024
    $region37: #{_forward.1} parent=1 // pred_fallthru
      _
    // Predicated region
    $region38: #{_forward.1} parent=1 // pred_check
      _
    $region39: #{_forward.1} parent=1 // pred_check_branch
      %64 = sbr.rel (0) target = $region41
    $region40: #{_forward.1} parent=1 // pred_region
      %65 = dma.done [#allocation6], 1024
    $region41: #{_forward.1} parent=1 // pred_fallthru
      _
    %v67 = vld [vmem:[%s0] sm:$0xff]
    %v68 = vld [vmem:[%s1] sm:$0xf]
    %v69 = vld [vmem:[%s1 + $0x4] sm:$0xf]
    %v70 = vld [vmem:[%s1 + $0x8] sm:$0xf]
    %v71 = vld [vmem:[%s1 + $0xc] sm:$0xf]
    %v72 = vld [vmem:[#allocation2] sm:$0x1]
    %v73 = vpack.c.bf16 %v67, %v67
    %v75 = vlaneseq
    %v76 = vshrl.u32 %v75, 7
    %v77 = vsub.s32 0, %v76
    %v78 = vrot.slane %v72, %v77
    %v84 = vunpack.c.l.b16 %v68
    %v85 = vunpack.c.l.b16 %v69
    %v86 = vunpack.c.l.b16 %v70
    %v87 = vunpack.c.l.b16 %v71
    %v88 = vpack.c.b16 %v85, %v84
    %v89 = vpack.c.b16 %v87, %v86
    %vm92 = vcmask 261120
    %v94 = vsel %vm92, %v73, 0
    %96 = vmatprep.subr.bf16.mxu0 0
    %97 = vmatpush1.bf16.msra.mxu0 %v88
    %98 = vmatprep.subr.bf16.mxu0 0
    %99 = vmatpush1.bf16.msra.mxu0 %v89
    %100 = vmatprep.subr.bf16.mxu0 0
    %101 = vmatpush1.bf16.msra.mxu0 0
    %102 = vmatprep.subr.bf16.mxu0 0
    %103 = vmatpush1.bf16.msra.mxu0 0
    %104 = vmatprep.subr.bf16.mxu0 0
    %105 = vmatpush1.bf16.msra.mxu0 0
    %106 = vmatprep.subr.bf16.mxu0 0
    %107 = vmatpush1.bf16.msra.mxu0 0
    %108 = vmatprep.subr.bf16.mxu0 0
    %109 = vmatpush1.bf16.msra.mxu0 0
    %110 = vmatprep.subr.bf16.mxu0 0
    %111 = vmatpush1.bf16.msra.mxu0 0
    %112 = vmatprep.subr.bf16.mxu0 0
    %113 = vmatpush1.bf16.msra.mxu0 0
    %114 = vmatprep.subr.bf16.mxu0 0
    %115 = vmatpush1.bf16.msra.mxu0 0
    %116 = vmatprep.subr.bf16.mxu0 0
    %117 = vmatpush1.bf16.msra.mxu0 0
    %118 = vmatprep.subr.bf16.mxu0 0
    %119 = vmatpush1.bf16.msra.mxu0 0
    %120 = vmatprep.subr.bf16.mxu0 0
    %121 = vmatpush1.bf16.msra.mxu0 0
    %122 = vmatprep.subr.bf16.mxu0 0
    %123 = vmatpush1.bf16.msra.mxu0 0
    %124 = vmatprep.subr.bf16.mxu0 0
    %125 = vmatpush1.bf16.msra.mxu0 0
    %126 = vmatprep.subr.bf16.mxu0 0
    %127 = vmatpush1.bf16.msra.mxu0 0
    %128 = vmatprep.mubr.bf16.mxu0 0
    %129 = vmatmul.mubr.bf16.gmra.mrb[0].mxu0 %v94
    %v130 = vpop.f32.mrb[0].mxu0
    %v131 = vadd.f32 %v78, %v130
    %v132 = vpop.f32.mrb[0].mxu0
    %v133 = vpop.f32.mrb[0].mxu0
    %v134 = vpop.f32.mrb[0].mxu0
    %135 = vdwg.mxu0
    %v136 = vmax.f32 %v131, 0.0
    %v137 = vld [vmem:[#allocation5] sm:$0xf]
    %v138 = vld [vmem:[#allocation5 + $0x4] sm:$0xf]
    %v139 = vld [vmem:[#allocation5 + $0x8] sm:$0xf]
    %v140 = vld [vmem:[#allocation5 + $0xc] sm:$0xf]
    %v141 = vld [vmem:[#allocation5 + $0x10] sm:$0xf]
    %v142 = vld [vmem:[#allocation5 + $0x14] sm:$0xf]
    %v143 = vld [vmem:[#allocation5 + $0x18] sm:$0xf]
    %v144 = vld [vmem:[#allocation5 + $0x1c] sm:$0xf]
    %v145 = vld [vmem:[#allocation5 + $0x20] sm:$0xf]
    %v146 = vld [vmem:[#allocation5 + $0x24] sm:$0xf]
    %v147 = vld [vmem:[#allocation5 + $0x28] sm:$0xf]
    %v148 = vld [vmem:[#allocation5 + $0x2c] sm:$0xf]
    %v149 = vld [vmem:[#allocation5 + $0x30] sm:$0xf]
    %v150 = vld [vmem:[#allocation5 + $0x34] sm:$0xf]
    %v151 = vld [vmem:[#allocation5 + $0x38] sm:$0xf]
    %v152 = vld [vmem:[#allocation5 + $0x3c] sm:$0xf]
    %v153 = vld [vmem:[%s4] sm:$0x1]
    %v154 = vpack.c.bf16 %v136, %v136
    %v156 = vlaneseq
    %v157 = vshrl.u32 %v156, 7
    %v158 = vsub.s32 0, %v157
    %v159 = vrot.slane %v153, %v158
    %v177 = vunpack.c.l.b16 %v137
    %v178 = vunpack.c.l.b16 %v138
    %v179 = vunpack.c.l.b16 %v139
    %v180 = vunpack.c.l.b16 %v140
    %v181 = vunpack.c.l.b16 %v141
    %v182 = vunpack.c.l.b16 %v142
    %v183 = vunpack.c.l.b16 %v143
    %v184 = vunpack.c.l.b16 %v144
    %v185 = vunpack.c.l.b16 %v145
    %v186 = vunpack.c.l.b16 %v146
    %v187 = vunpack.c.l.b16 %v147
    %v188 = vunpack.c.l.b16 %v148
    %v189 = vunpack.c.l.b16 %v149
    %v190 = vunpack.c.l.b16 %v150
    %v191 = vunpack.c.l.b16 %v151
    %v192 = vunpack.c.l.b16 %v152
    %v193 = vpack.c.b16 %v178, %v177
    %v194 = vpack.c.b16 %v180, %v179
    %v195 = vpack.c.b16 %v182, %v181
    %v196 = vpack.c.b16 %v184, %v183
    %v197 = vpack.c.b16 %v186, %v185
    %v198 = vpack.c.b16 %v188, %v187
    %v199 = vpack.c.b16 %v190, %v189
    %v200 = vpack.c.b16 %v192, %v191
    %209 = vmatprep.subr.bf16.mxu0 0
    %210 = vmatpush1.bf16.msra.mxu0 %v193
    %211 = vmatprep.subr.bf16.mxu0 0
    %212 = vmatpush1.bf16.msra.mxu0 %v194
    %213 = vmatprep.subr.bf16.mxu0 0
    %214 = vmatpush1.bf16.msra.mxu0 %v195
    %215 = vmatprep.subr.bf16.mxu0 0
    %216 = vmatpush1.bf16.msra.mxu0 %v196
    %217 = vmatprep.subr.bf16.mxu0 0
    %218 = vmatpush1.bf16.msra.mxu0 %v197
    %219 = vmatprep.subr.bf16.mxu0 0
    %220 = vmatpush1.bf16.msra.mxu0 %v198
    %221 = vmatprep.subr.bf16.mxu0 0
    %222 = vmatpush1.bf16.msra.mxu0 %v199
    %223 = vmatprep.subr.bf16.mxu0 0
    %224 = vmatpush1.bf16.msra.mxu0 %v200
    %225 = vmatprep.subr.bf16.mxu0 0
    %226 = vmatpush1.bf16.msra.mxu0 0
    %227 = vmatprep.subr.bf16.mxu0 0
    %228 = vmatpush1.bf16.msra.mxu0 0
    %229 = vmatprep.subr.bf16.mxu0 0
    %230 = vmatpush1.bf16.msra.mxu0 0
    %231 = vmatprep.subr.bf16.mxu0 0
    %232 = vmatpush1.bf16.msra.mxu0 0
    %233 = vmatprep.subr.bf16.mxu0 0
    %234 = vmatpush1.bf16.msra.mxu0 0
    %235 = vmatprep.subr.bf16.mxu0 0
    %236 = vmatpush1.bf16.msra.mxu0 0
    %237 = vmatprep.subr.bf16.mxu0 0
    %238 = vmatpush1.bf16.msra.mxu0 0
    %239 = vmatprep.subr.bf16.mxu0 0
    %240 = vmatpush1.bf16.msra.mxu0 0
    %241 = vmatprep.mubr.bf16.mxu0 0
    %242 = vmatmul.mubr.bf16.gmra.mrb[0].mxu0 %v154
    %v243 = vpop.f32.mrb[0].mxu0
    %v244 = vadd.f32 %v159, %v243
    %v245 = vpop.f32.mrb[0].mxu0
    %v246 = vpop.f32.mrb[0].mxu0
    %v247 = vpop.f32.mrb[0].mxu0
    %248 = vdwg.mxu0
    %v249 = vmax.f32 %v244, 0.0
    %v250 = vld [vmem:[#allocation7] sm:$0xf]
    %v251 = vld [vmem:[#allocation7 + $0x4] sm:$0xf]
    %v252 = vld [vmem:[#allocation7 + $0x8] sm:$0xf]
    %v253 = vld [vmem:[#allocation7 + $0xc] sm:$0xf]
    %v254 = vld [vmem:[#allocation7 + $0x10] sm:$0xf]
    %v255 = vld [vmem:[#allocation7 + $0x14] sm:$0xf]
    %v256 = vld [vmem:[#allocation7 + $0x18] sm:$0xf]
    %v257 = vld [vmem:[#allocation7 + $0x1c] sm:$0xf]
    %v258 = vld [vmem:[#allocation7 + $0x20] sm:$0xf]
    %v259 = vld [vmem:[#allocation7 + $0x24] sm:$0xf]
    %v260 = vld [vmem:[#allocation7 + $0x28] sm:$0xf]
    %v261 = vld [vmem:[#allocation7 + $0x2c] sm:$0xf]
    %v262 = vld [vmem:[#allocation7 + $0x30] sm:$0xf]
    %v263 = vld [vmem:[#allocation7 + $0x34] sm:$0xf]
    %v264 = vld [vmem:[#allocation7 + $0x38] sm:$0xf]
    %v265 = vld [vmem:[#allocation7 + $0x3c] sm:$0xf]
    %v266 = vld [vmem:[%s6] sm:$0x1]
    %v267 = vpack.c.bf16 %v249, %v249
    %v269 = vlaneseq
    %v270 = vshrl.u32 %v269, 7
    %v271 = vsub.s32 0, %v270
    %v272 = vrot.slane %v266, %v271
    %v290 = vunpack.c.l.b16 %v250
    %v291 = vunpack.c.l.b16 %v251
    %v292 = vunpack.c.l.b16 %v252
    %v293 = vunpack.c.l.b16 %v253
    %v294 = vunpack.c.l.b16 %v254
    %v295 = vunpack.c.l.b16 %v255
    %v296 = vunpack.c.l.b16 %v256
    %v297 = vunpack.c.l.b16 %v257
    %v298 = vunpack.c.l.b16 %v258
    %v299 = vunpack.c.l.b16 %v259
    %v300 = vunpack.c.l.b16 %v260
    %v301 = vunpack.c.l.b16 %v261
    %v302 = vunpack.c.l.b16 %v262
    %v303 = vunpack.c.l.b16 %v263
    %v304 = vunpack.c.l.b16 %v264
    %v305 = vunpack.c.l.b16 %v265
    %v306 = vpack.c.b16 %v291, %v290
    %v307 = vpack.c.b16 %v293, %v292
    %v308 = vpack.c.b16 %v295, %v294
    %v309 = vpack.c.b16 %v297, %v296
    %v310 = vpack.c.b16 %v299, %v298
    %v311 = vpack.c.b16 %v301, %v300
    %v312 = vpack.c.b16 %v303, %v302
    %v313 = vpack.c.b16 %v305, %v304
    %322 = vmatprep.subr.bf16.mxu0 0
    %323 = vmatpush1.bf16.msra.mxu0 %v306
    %324 = vmatprep.subr.bf16.mxu0 0
    %325 = vmatpush1.bf16.msra.mxu0 %v307
    %326 = vmatprep.subr.bf16.mxu0 0
    %327 = vmatpush1.bf16.msra.mxu0 %v308
    %328 = vmatprep.subr.bf16.mxu0 0
    %329 = vmatpush1.bf16.msra.mxu0 %v309
    %330 = vmatprep.subr.bf16.mxu0 0
    %331 = vmatpush1.bf16.msra.mxu0 %v310
    %332 = vmatprep.subr.bf16.mxu0 0
    %333 = vmatpush1.bf16.msra.mxu0 %v311
    %334 = vmatprep.subr.bf16.mxu0 0
    %335 = vmatpush1.bf16.msra.mxu0 %v312
    %336 = vmatprep.subr.bf16.mxu0 0
    %337 = vmatpush1.bf16.msra.mxu0 %v313
    %338 = vmatprep.subr.bf16.mxu0 0
    %339 = vmatpush1.bf16.msra.mxu0 0
    %340 = vmatprep.subr.bf16.mxu0 0
    %341 = vmatpush1.bf16.msra.mxu0 0
    %342 = vmatprep.subr.bf16.mxu0 0
    %343 = vmatpush1.bf16.msra.mxu0 0
    %344 = vmatprep.subr.bf16.mxu0 0
    %345 = vmatpush1.bf16.msra.mxu0 0
    %346 = vmatprep.subr.bf16.mxu0 0
    %347 = vmatpush1.bf16.msra.mxu0 0
    %348 = vmatprep.subr.bf16.mxu0 0
    %349 = vmatpush1.bf16.msra.mxu0 0
    %350 = vmatprep.subr.bf16.mxu0 0
    %351 = vmatpush1.bf16.msra.mxu0 0
    %352 = vmatprep.subr.bf16.mxu0 0
    %353 = vmatpush1.bf16.msra.mxu0 0
    %354 = vmatprep.mubr.bf16.mxu0 0
    %355 = vmatmul.mubr.bf16.gmra.mrb[0].mxu0 %v267
    %v356 = vpop.f32.mrb[0].mxu0
    %v357 = vadd.f32 %v272, %v356
    %v358 = vpop.f32.mrb[0].mxu0
    %v359 = vpop.f32.mrb[0].mxu0
    %v360 = vpop.f32.mrb[0].mxu0
    %361 = vdwg.mxu0
    %362 = vst [vmem:[#allocation8] sm:$0xff] %v357
    // Predicated region
    $region42: #{_forward.1} parent=1 // pred_check
      _
    $region43: #{_forward.1} parent=1 // pred_check_branch
      %364 = sbr.rel (0) target = $region45
    $region44: #{_forward.1} parent=1 // pred_region
      %s366 = ssub.s32 128, 128
      %367 = vsyncadd [#allocation4], %s366
      %s369 = sshll.u32 [#allocation8], 4
      %s370 = int_to_ptr.vmem [resolvable:$true] %s369
      %372 = dma.vmem_to_hbm [thread:$0]  %s370, 128, %s7, [#allocation4]
    $region45: #{_forward.1} parent=1 // pred_fallthru
      _
    // Predicated region
    $region46: #{_forward.1} parent=1 // pred_check
      _
    $region47: #{_forward.1} parent=1 // pred_check_branch
      %374 = sbr.rel (0) target = $region49
    $region48: #{_forward.1} parent=1 // pred_region
      %375 = dma.done [#allocation4], 128
    $region49: #{_forward.1} parent=1 // pred_fallthru
      _
    %376 = vsyncpa [#allocation3], 1
    %377 = vsyncpa [#allocation6], 1
    %378 = vsyncpa [#allocation4], 1

</llo_original>
